<compile_context>
chip_gen: v5e
topology: v5e:2x2
jax: 0.10.0
libtpu: 0.0.40
codegen_flags: <defaults>
</compile_context>

<pallas_src>
import functools

import jax
import jax.numpy as jnp
from jax import lax
from jax.experimental import pallas as pl
from jax.experimental.pallas import tpu as pltpu


# ---------------------------------------------------------------------------
# Hardware queries / sizing helpers
# ---------------------------------------------------------------------------

def _vmem_capacity_bytes():
    try:
        return int(pltpu.get_tpu_info().vmem_capacity_bytes)
    except Exception:
        return 64 * 1024 * 1024            # conservative floor (v7x per-core)


def _prefer_256_tiles():
    # v6e / v7x MXU is 2x256x256 -> prefer 256 tiles; v5e is 4x128x128.
    try:
        kind = jax.devices()[0].device_kind.lower()
    except Exception:
        return True
    return not ("v5 lite" in kind or "v5e" in kind or "v5lite" in kind)


def _vmem_limit_bytes(est, cap):
    hi = max(cap - (4 << 20), 16 << 20)            # leave headroom under physical
    return int(min(hi, max(2 * est, 32 << 20)))


def _tiled_est_bytes(tm, tn, d, isz):
    return (2 * (tm + tn) * d * isz                # double-buffered sat/grd blocks
            + 2 * (tm + tn) * 4                    # pos col/row blocks
            + 2 * 8 * 128 * 4                      # output block
            + 5 * tm * tn * 4)                     # sim / e / val temporaries


def _pick_tiles(b, d, isz, cap):
    """Largest (TM, TN) that divide B and fit the VMEM budget; shrink TN first."""
    if _prefer_256_tiles():
        tm_order, tn_order = (256, 128, 64, 32, 16, 8), (256, 128)
    else:
        tm_order, tn_order = (128, 256, 64, 32, 16, 8), (128, 256)
    tm_cands = [t for t in tm_order if b % t == 0] or [b]
    tn_cands = [t for t in tn_order if b % t == 0] or [b]
    budget = 0.7 * cap
    for tm in tm_cands:                 # TM largest first
        for tn in tn_cands:             # shrink the streamed TN first
            if _tiled_est_bytes(tm, tn, d, isz) <= budget:
                return tm, tn
    return tm_cands[-1], tn_cands[-1]


# ---------------------------------------------------------------------------
# Fused single-tile kernel (B <= 256): pos computed in-kernel, optional
# 2-way column split so v7x's two TensorCores both get work.
# ---------------------------------------------------------------------------

def _fused_kernel(sat_ref, grd_ref, out_ref, *, w2, n_split):
    b = sat_ref.shape[0]
    half = b // n_split

    if n_split == 1:
        start = 0
        grd_h = grd_ref[...]                               # [B, D]
    else:
        start = pl.multiple_of(pl.program_id(0) * half, 8)
        grd_h = grd_ref[pl.ds(start, half), :]             # [half, D]

    # w*pos_i for every row i:  w*pos = 2w - 2w*<sat_i, grd_i>   (in-kernel,
    # from the already-resident blocks -> no second HBM pass for pos).
    sat_f = sat_ref[...].astype(jnp.float32)
    grd_f = grd_ref[...].astype(jnp.float32)
    posw_col = w2 - w2 * jnp.sum(sat_f * grd_f, axis=1, keepdims=True)   # [B, 1]

    # MXU NT matmul, f32 accumulation, native-dtype operands.
    sim = lax.dot_general(sat_ref[...], grd_h,
                          dimension_numbers=(((1,), (1,)), ((), ())),
                          preferred_element_type=jnp.float32)            # [B, half]

    # w*pos_j for the columns of this split, read off sim's diagonal:
    # sim[start+jj, jj] = <sat_{start+jj}, grd_{start+jj}>.
    row_idx = lax.broadcasted_iota(jnp.int32, sim.shape, 0)
    col_idx = lax.broadcasted_iota(jnp.int32, sim.shape, 1)
    diag_sim = jnp.sum(jnp.where(row_idx == col_idx + start, sim, 0.0),
                       axis=0, keepdims=True)                            # [1, half]
    posw_row = w2 - w2 * diag_sim

    # Shared-exp / merged-log soft margin: 2 transcendentals per element.
    e = jnp.exp(w2 * sim - w2)                    # exp(-w*dist)
    a_i = jnp.exp(posw_col)                       # [B, 1]
    a_j = jnp.exp(posw_row)                       # [1, half]
    val = jnp.log((1.0 + a_j * e) * (1.0 + a_i * e))

    partial = jnp.sum(jnp.sum(val, axis=1, keepdims=True), axis=0, keepdims=True)
    out_ref[...] = jnp.zeros_like(out_ref) + partial      # lane-dense broadcast


# ---------------------------------------------------------------------------
# Tiled kernel (B > 256): grid = (RB, CB), pos precomputed (w-scaled) on host.
# ---------------------------------------------------------------------------

def _tiled_kernel(sat_ref, grd_ref, posw_c_ref, posw_r_ref, out_ref, *, w2):
    ci = pl.program_id(1)

    # Output block is resident across the column (reduction) axis: init once.
    @pl.when(ci == 0)
    def _():
        out_ref[...] = jnp.zeros_like(out_ref)

    sim = lax.dot_general(sat_ref[...], grd_ref[...],
                          dimension_numbers=(((1,), (1,)), ((), ())),
                          preferred_element_type=jnp.float32)            # [TM, TN]

    e = jnp.exp(w2 * sim - w2)                    # exp(-w*dist), shared term
    a_i = jnp.exp(posw_c_ref[...])                # [TM, 1]  (O(TM) exps)
    a_j = jnp.exp(posw_r_ref[...])                # [1, TN]  (O(TN) exps)
    val = jnp.log((1.0 + a_j * e) * (1.0 + a_i * e))

    partial = jnp.sum(jnp.sum(val, axis=1, keepdims=True), axis=0, keepdims=True)
    out_ref[...] += partial                       # final scale applied on host


# ---------------------------------------------------------------------------
# Wrapper
# ---------------------------------------------------------------------------

def triplet_loss(grd_global, sat_global, *, train_batch_size, loss_weight):
    """Pallas equivalent of triplet_loss.forward(grd_global, sat_global, args)."""
    assert grd_global.shape == sat_global.shape
    B, D = grd_global.shape
    w2 = 2.0 * float(loss_weight)
    # NOTE: pair_n uses train_batch_size (not B), exactly like the reference.
    pair_n = float(train_batch_size) * (float(train_batch_size) - 1.0)
    inv_scale = 1.0 / (2.0 * pair_n)

    cap = _vmem_capacity_bytes()
    isz = jnp.dtype(grd_global.dtype).itemsize

    fused_est = (4 * B * D * isz        # double-buffered sat/grd blocks
                 + 2 * B * D * 4        # f32 casts for the in-kernel pos
                 + 8 * B * B * 4        # sim / e / val temporaries
                 + (1 << 20))

    if B <= 256 and fused_est <= 0.6 * cap:
        # -------- fused single-tile path (the common fine-tune batch) --------
        n_split = 2 if (B % 16 == 0 and B >= 16) else 1   # v7x: 1 column half/TC
        partials = pl.pallas_call(
            functools.partial(_fused_kernel, w2=w2, n_split=n_split),
            out_shape=jax.ShapeDtypeStruct((8 * n_split, 128), jnp.float32),
            grid_spec=pltpu.PrefetchScalarGridSpec(
                num_scalar_prefetch=0,
                grid=(n_split,),
                in_specs=[
                    pl.BlockSpec((B, D), lambda s: (0, 0)),   # sat (resident)
                    pl.BlockSpec((B, D), lambda s: (0, 0)),   # grd (resident)
                ],
                out_specs=pl.BlockSpec((8, 128), lambda s: (s, 0)),
            ),
            compiler_params=pltpu.CompilerParams(
                dimension_semantics=("parallel",),
                vmem_limit_bytes=_vmem_limit_bytes(fused_est, cap)),
        )(sat_global, grd_global)
    else:
        # -------- tiled path (large B): host-side w-scaled pos ---------------
        TM, TN = _pick_tiles(B, D, isz, cap)
        RB, CB = B // TM, B // TN
        est = _tiled_est_bytes(TM, TN, D, isz)

        sat32 = sat_global.astype(jnp.float32)
        grd32 = grd_global.astype(jnp.float32)
        posw = w2 - w2 * jnp.sum(sat32 * grd32, axis=1)          # w * pos, [B]

        partials = pl.pallas_call(
            functools.partial(_tiled_kernel, w2=w2),
            out_shape=jax.ShapeDtypeStruct((8 * RB, 128), jnp.float32),
            grid_spec=pltpu.PrefetchScalarGridSpec(
                num_scalar_prefetch=0,
                grid=(RB, CB),
                in_specs=[
                    pl.BlockSpec((TM, D), lambda ri, ci: (ri, 0)),   # sat rows
                    pl.BlockSpec((TN, D), lambda ri, ci: (ci, 0)),   # grd cols
                    pl.BlockSpec((TM, 1), lambda ri, ci: (ri, 0)),   # w*pos[i]
                    pl.BlockSpec((1, TN), lambda ri, ci: (0, ci)),   # w*pos[j]
                ],
                out_specs=pl.BlockSpec((8, 128), lambda ri, ci: (ri, 0)),
            ),
            compiler_params=pltpu.CompilerParams(
                dimension_semantics=("parallel", "arbitrary"),
                vmem_limit_bytes=_vmem_limit_bytes(est, cap)),
        )(sat_global, grd_global, posw.reshape(B, 1), posw.reshape(1, B))

    # Each (8,128) output block is uniformly filled with its partial sum;
    # take element (0,0) of every block and apply the final scale once.
    return inv_scale * jnp.sum(partials[::8, 0])


# ---------------------------------------------------------------------------
# Pure-JAX reference mirroring the PyTorch code exactly.
# ---------------------------------------------------------------------------

def _reference(grd_global, sat_global, train_batch_size, loss_weight):
    dist_array = 2.0 - 2.0 * jnp.matmul(sat_global, grd_global.T)
    pos_dist = jnp.diag(dist_array)
    pair_n = train_batch_size * (train_batch_size - 1.0)
    t_g2s = pos_dist - dist_array
    loss_g2s = jnp.sum(jnp.log(1.0 + jnp.exp(t_g2s * loss_weight))) / pair_n
    t_s2g = pos_dist[:, None] - dist_array
    loss_s2g = jnp.sum(jnp.log(1.0 + jnp.exp(t_s2g * loss_weight))) / pair_n
    return (loss_g2s + loss_s2g) / 2.0


def _make_inputs(key, b, d):
    kg, ks = jax.random.split(key)
    grd = jax.random.normal(kg, (b, d), dtype=jnp.float32)
    sat = jax.random.normal(ks, (b, d), dtype=jnp.float32)
    grd = grd / jnp.linalg.norm(grd, axis=1, keepdims=True)
    sat = sat / jnp.linalg.norm(sat, axis=1, keepdims=True)
    return grd, sat


if __name__ == "__main__":
    loss_weight = 10.0
    key = jax.random.PRNGKey(0)
    k1, k2 = jax.random.split(key)

    # --- fused path (B <= 256, 2-way column split exercised: B % 16 == 0) ---
    B, D = 16, 32
    grd, sat = _make_inputs(k1, B, D)
    loss = jax.block_until_ready(
        triplet_loss(grd, sat, train_batch_size=B, loss_weight=loss_weight))
    ref = _reference(grd, sat, float(B), loss_weight)
    assert jnp.allclose(loss, ref, rtol=1e-4, atol=1e-4), (loss, ref)

    # --- tiled path (B > 256): grid (RB, CB) with cross-step accumulation ---
    B2, D2 = 384, 64
    grd2, sat2 = _make_inputs(k2, B2, D2)
    loss2 = jax.block_until_ready(
        triplet_loss(grd2, sat2, train_batch_size=B2, loss_weight=loss_weight))
    ref2 = _reference(grd2, sat2, float(B2), loss_weight)
    assert jnp.allclose(loss2, ref2, rtol=1e-4, atol=1e-4), (loss2, ref2)

    print("KERNEL_OK")
</pallas_src>

<mosaic_0001>
module attributes {stable_mosaic.version = 11 : i64} {
  func.func @_fused_kernel(%arg0: i32, %arg1: memref<16x32xf32, #tpu.memory_space<vmem>>, %arg2: memref<16x32xf32, #tpu.memory_space<vmem>>, %arg3: memref<8x128xf32, #tpu.memory_space<vmem>>) attributes {dimension_semantics = [#tpu.dimension_semantics<parallel>], iteration_bounds = array<i64: 2>, scalar_prefetch = 0 : i64, scratch_operands = 0 : i64, tpu.core_type = #tpu.core_type<tc>, window_params = [{pipeline_mode = #tpu.pipeline_mode<synchronous>, transform_indices = @transform_0, window_bounds = array<i64: 16, 32>}, {pipeline_mode = #tpu.pipeline_mode<synchronous>, transform_indices = @transform_1, window_bounds = array<i64: 16, 32>}, {transform_indices = @transform_2, window_bounds = array<i64: 8, 128>}]} {
    %c8_i32 = arith.constant 8 : i32
    %0 = arith.muli %arg0, %c8_i32 : i32
    %1 = tpu.assume_multiple %0, 8 : i32
    %2 = arith.index_cast %1 : i32 to index
    %c0 = arith.constant 0 : index
    %3 = vector.load %arg2[%2, %c0] : memref<16x32xf32, #tpu.memory_space<vmem>>, vector<8x32xf32>
    %c0_0 = arith.constant 0 : index
    %c0_1 = arith.constant 0 : index
    %4 = vector.load %arg1[%c0_0, %c0_1] : memref<16x32xf32, #tpu.memory_space<vmem>>, vector<16x32xf32>
    %c0_2 = arith.constant 0 : index
    %c0_3 = arith.constant 0 : index
    %5 = vector.load %arg2[%c0_2, %c0_3] : memref<16x32xf32, #tpu.memory_space<vmem>>, vector<16x32xf32>
    %6 = arith.mulf %4, %5 : vector<16x32xf32>
    %cst = arith.constant dense<0.000000e+00> : vector<16xf32>
    %7 = vector.multi_reduction <add>, %6, %cst [1] : vector<16x32xf32> to vector<16xf32>
    %8 = vector.shape_cast %7 : vector<16xf32> to vector<16x1xf32>
    %cst_4 = arith.constant 2.000000e+01 : f32
    %9 = vector.broadcast %cst_4 : f32 to vector<16x1xf32>
    %10 = arith.mulf %9, %8 : vector<16x1xf32>
    %cst_5 = arith.constant 2.000000e+01 : f32
    %11 = vector.broadcast %cst_5 : f32 to vector<16x1xf32>
    %12 = arith.subf %11, %10 : vector<16x1xf32>
    %c0_6 = arith.constant 0 : index
    %c0_7 = arith.constant 0 : index
    %13 = vector.load %arg1[%c0_6, %c0_7] : memref<16x32xf32, #tpu.memory_space<vmem>>, vector<16x32xf32>
    %cst_8 = arith.constant dense<0.000000e+00> : vector<16x8xf32>
    %14 = tpu.matmul %13, %3, %cst_8 {dimension_numbers = #tpu.dot_dimension_numbers<[1], [1], [0], [0], [0, 0, 1, 0], [], []>} : vector<16x32xf32>, vector<8x32xf32>, vector<16x8xf32> -> vector<16x8xf32>
    %15 = tpu.iota {dimensions = array<i32: 0>} : vector<16x8xi32>
    %16 = tpu.iota {dimensions = array<i32: 1>} : vector<16x8xi32>
    %17 = vector.broadcast %1 : i32 to vector<16x8xi32>
    %18 = arith.addi %16, %17 : vector<16x8xi32>
    %19 = arith.cmpi eq, %15, %18 : vector<16x8xi32>
    %cst_9 = arith.constant 0.000000e+00 : f32
    %20 = vector.broadcast %cst_9 : f32 to vector<16x8xf32>
    %21 = arith.select %19, %14, %20 : vector<16x8xi1>, vector<16x8xf32>
    %cst_10 = arith.constant dense<0.000000e+00> : vector<8xf32>
    %22 = vector.multi_reduction <add>, %21, %cst_10 [0] : vector<16x8xf32> to vector<8xf32>
    %23 = vector.shape_cast %22 : vector<8xf32> to vector<1x8xf32>
    %cst_11 = arith.constant 2.000000e+01 : f32
    %24 = vector.broadcast %cst_11 : f32 to vector<1x8xf32>
    %25 = arith.mulf %24, %23 : vector<1x8xf32>
    %cst_12 = arith.constant 2.000000e+01 : f32
    %26 = vector.broadcast %cst_12 : f32 to vector<1x8xf32>
    %27 = arith.subf %26, %25 : vector<1x8xf32>
    %cst_13 = arith.constant 2.000000e+01 : f32
    %28 = vector.broadcast %cst_13 : f32 to vector<16x8xf32>
    %29 = arith.mulf %28, %14 : vector<16x8xf32>
    %cst_14 = arith.constant 2.000000e+01 : f32
    %30 = vector.broadcast %cst_14 : f32 to vector<16x8xf32>
    %31 = arith.subf %29, %30 : vector<16x8xf32>
    %32 = math.exp %31 : vector<16x8xf32>
    %33 = math.exp %12 : vector<16x1xf32>
    %34 = math.exp %27 : vector<1x8xf32>
    %35 = vector.broadcast %34 : vector<1x8xf32> to vector<16x8xf32>
    %36 = arith.mulf %35, %32 : vector<16x8xf32>
    %cst_15 = arith.constant 1.000000e+00 : f32
    %37 = vector.broadcast %cst_15 : f32 to vector<16x8xf32>
    %38 = arith.addf %37, %36 : vector<16x8xf32>
    %39 = vector.broadcast %33 : vector<16x1xf32> to vector<16x8xf32>
    %40 = arith.mulf %39, %32 : vector<16x8xf32>
    %cst_16 = arith.constant 1.000000e+00 : f32
    %41 = vector.broadcast %cst_16 : f32 to vector<16x8xf32>
    %42 = arith.addf %41, %40 : vector<16x8xf32>
    %43 = arith.mulf %38, %42 : vector<16x8xf32>
    %44 = math.log %43 : vector<16x8xf32>
    %cst_17 = arith.constant dense<0.000000e+00> : vector<16xf32>
    %45 = vector.multi_reduction <add>, %44, %cst_17 [1] : vector<16x8xf32> to vector<16xf32>
    %46 = vector.shape_cast %45 : vector<16xf32> to vector<16x1xf32>
    %cst_18 = arith.constant dense<0.000000e+00> : vector<1xf32>
    %47 = vector.multi_reduction <add>, %46, %cst_18 [0] : vector<16x1xf32> to vector<1xf32>
    %48 = vector.shape_cast %47 : vector<1xf32> to vector<1x1xf32>
    %cst_19 = arith.constant 0.000000e+00 : f32
    %49 = vector.broadcast %cst_19 : f32 to vector<8x128xf32>
    %50 = vector.broadcast %48 : vector<1x1xf32> to vector<8x128xf32>
    %51 = arith.addf %49, %50 : vector<8x128xf32>
    %c0_20 = arith.constant 0 : index
    %c0_21 = arith.constant 0 : index
    %52 = vector.load %arg3[%c0_20, %c0_21] : memref<8x128xf32, #tpu.memory_space<vmem>>, vector<8x128xf32>
    tpu.vector_store %arg3[%c0_20, %c0_21], %51 {strides = array<i32>} : memref<8x128xf32, #tpu.memory_space<vmem>>, vector<8x128xf32>,
    return
  }
  func.func @transform_0(%arg0: i32) -> (i32, i32) {
    %c0_i32 = arith.constant 0 : i32
    %c0_i32_0 = arith.constant 0 : i32
    %c0_i32_1 = arith.constant 0 : i32
    return %c0_i32, %c0_i32_0 : i32, i32
  }
  func.func @transform_1(%arg0: i32) -> (i32, i32) {
    %c0_i32 = arith.constant 0 : i32
    %c0_i32_0 = arith.constant 0 : i32
    %c0_i32_1 = arith.constant 0 : i32
    return %c0_i32, %c0_i32_0 : i32, i32
  }
  func.func @transform_2(%arg0: i32) -> (i32, i32) {
    %c0_i32 = arith.constant 0 : i32
    %c0_i32_0 = arith.constant 0 : i32
    return %arg0, %c0_i32 : i32, i32
  }
}

</mosaic_0001>

<llo_original>
// kernel: tpu_custom_call.1
$region0: #{tpu_custom_call.1}
  #allocation0 [shape = 'u32[]', space=smem, size = 0x4, offset = 0x4, fixed_abs, tag = 'smem constant byte address 0x4 - core index']
  #allocation1 [shape = 'u32[72,128]{1,0:T(1,128)}', space=vmem, size = 0x9000, scoped, tag = 'internal scratch']
  %s0 = inlined_call_operand.hbm [shape: f32[16,32], index: 0, kind: input, shape index: {}]
  %s1 = inlined_call_operand.hbm [shape: f32[16,32], index: 1, kind: input, shape index: {}]
  %s2 = inlined_call_operand.hbm [shape: f32[16,128], index: 2, kind: output, shape index: {}]
  %s3 = sld [smem:[#allocation0]]
  $region49: #{tpu_custom_call.1} parent=0
    _
  %s5 = ssub.s32 1, %s3
  %s6 = scalar_select 0, %s5, %s3
  $region1: #{tpu_custom_call.1} parent=0
    #allocation2 [shape = 'u8[8192]{0}', space=vmem, size = 0x2000, scoped, tag = 'input window, operand 0, single buffered']
    #allocation3 [shape = 's32[2]{0}', space=sflag, size = 0x8, scoped, tag = 'scoped memory for tpu_custom_call.1']
    #allocation4 [shape = 's32[2]{0}', space=sflag, size = 0x8, scoped, tag = 'scoped memory for tpu_custom_call.1']
    #allocation5 [shape = 'u8[8192]{0}', space=vmem, size = 0x2000, scoped, tag = 'input window, operand 1, single buffered']
    #allocation6 [shape = 's32[1]{0}', space=sflag, size = 0x4, scoped, tag = 'scoped memory for tpu_custom_call.1']
    #allocation7 [shape = 'u8[8192]{0}', space=vmem, size = 0x2000, scoped, tag = 'output window, operand 0']
    %7 = vsyncpa [#allocation3], 0
    %8 = vsyncpa [#allocation6], 0
    %9 = vsyncpa [#allocation4], 0
    %s10 = scalar_lea.sflag [#allocation4], 1
    %11 = vsyncpa %s10, 0
    loop: start=0, step=1, limit=4
    $region2: #{tpu_custom_call.1} parent=1 // loop_pre_header
      _
    $region3: #{tpu_custom_call.1} parent=1 // loop_header
      %s13 = sphi 0, %s17
      %p14 = scmp.ge.s32.totalorder %s13, 4
      %s21 = sphi 0, %s21
      %s23 = sphi 0, %s21
      %s24 = sphi 0, %s23
      %s38 = sphi 0, %s24
      %s42 = sphi 0, %s42
      %s44 = sphi 0, %s42
      %s45 = sphi 0, %s44
      %s59 = sphi 0, %s45
      %s65 = sphi 0, %s67
      %s68 = sphi 0, %s65
      %s69 = sphi 0, %s68
      %s85 = sphi 0, %s69
    $region4: #{tpu_custom_call.1} parent=1 // loop_header_branch
      %16 = sbr.rel (%p14) target = $region8
    $region5: #{tpu_custom_call.1} parent=1 // loop_body
      %s18 = ssub.s32 %s13, 1
      %s19 = ssub.s32 %s13, 2
      %s20 = sadd.s32 %s13, 1
      %s22 = sadd.s32 %s21, 1
      %p25 = scmp.eq.s32.totalorder %s13, 1
      %p26 = scmp.ne.s32.totalorder %s21, %s23
      %p27 = scmp.eq.s32.totalorder %s13, 0
      %p28 = por %p26, %p27
      %p29 = scmp.ne.s32.totalorder %s21, %s23
      %p30 = scmp.eq.s32.totalorder %s18, 1
      %p31 = por %p29, %p30
      %p32 = scmp.ne.s32.totalorder %s23, %s24
      %p33 = scmp.eq.s32.totalorder %s18, 0
      %p34 = por %p32, %p33
      %p35 = scmp.ne.s32.totalorder %s23, %s24
      %p36 = scmp.eq.s32.totalorder %s19, 1
      %p37 = por %p35, %p36
      %p39 = scmp.ne.s32.totalorder %s24, %s38
      %p40 = scmp.eq.s32.totalorder %s19, 0
      %p41 = por %p39, %p40
      %s43 = sadd.s32 %s42, 1
      %p46 = scmp.eq.s32.totalorder %s13, 1
      %p47 = scmp.ne.s32.totalorder %s42, %s44
      %p48 = scmp.eq.s32.totalorder %s13, 0
      %p49 = por %p47, %p48
      %p50 = scmp.ne.s32.totalorder %s42, %s44
      %p51 = scmp.eq.s32.totalorder %s18, 1
      %p52 = por %p50, %p51
      %p53 = scmp.ne.s32.totalorder %s44, %s45
      %p54 = scmp.eq.s32.totalorder %s18, 0
      %p55 = por %p53, %p54
      %p56 = scmp.ne.s32.totalorder %s44, %s45
      %p57 = scmp.eq.s32.totalorder %s19, 1
      %p58 = por %p56, %p57
      %p60 = scmp.ne.s32.totalorder %s45, %s59
      %p61 = scmp.eq.s32.totalorder %s19, 0
      %p62 = por %p60, %p61
      %s63 = ssub.s32 %s13, %s20
      %p64 = scmp.eq.s32.totalorder %s63, 0
      %s66 = sadd.s32 %s65, 1
      %s67 = scalar_select %p64, %s65, %s66
      %p70 = pneg %p64
      %p71 = scmp.eq.s32.totalorder %s13, 1
      %p72 = por %p70, %p71
      %p73 = scmp.ne.s32.totalorder %s65, %s68
      %p74 = scmp.eq.s32.totalorder %s13, 0
      %p75 = por %p73, %p74
      %p76 = scmp.ne.s32.totalorder %s65, %s68
      %p77 = scmp.eq.s32.totalorder %s18, 1
      %p78 = por %p76, %p77
      %p79 = scmp.ne.s32.totalorder %s68, %s69
      %p80 = scmp.eq.s32.totalorder %s18, 0
      %p81 = por %p79, %p80
      %p82 = scmp.ne.s32.totalorder %s68, %s69
      %p83 = scmp.eq.s32.totalorder %s19, 1
      %p84 = por %p82, %p83
      %p86 = scmp.ne.s32.totalorder %s69, %s85
      %p87 = scmp.eq.s32.totalorder %s19, 0
      %p88 = por %p86, %p87
      %p89 = scmp.le.s32.totalorder 1, %s13
      %p90 = scmp.lt.s32.totalorder %s13, 3
      %p91 = pnand %p89, %p90
      %p92 = pneg %p91
      // Predicated region
      $region9: #{tpu_custom_call.1} parent=5 // pred_check
        _
      $region10: #{tpu_custom_call.1} parent=5 // pred_check_branch
        %94 = sbr.rel (%p91) target = $region12
      $region11: #{tpu_custom_call.1} parent=5 // pred_region
        %s95 = ssub.s32 %s13, 1
        // Predicated region
        $region13: #{tpu_custom_call.1} parent=11 // pred_check
          %p96 = pneg %p34
        $region14: #{tpu_custom_call.1} parent=11 // pred_check_branch
          %98 = sbr.rel (%p96) target = $region16
        $region15: #{tpu_custom_call.1} parent=11 // pred_region
          %100 = vsyncadd [#allocation3], 0
          %s101 = sshll.u32 %s0, 4
          %s102 = int_to_ptr.hbm [resolvable:$true] %s101
          %s103 = sshll.u32 [#allocation2], 4
          %s104 = int_to_ptr.vmem [resolvable:$true] %s103
          %109 = dma.hbm_to_vmem [thread:$0]  %s102, 256, %s104, [#allocation3], 128, 128, 8
        $region16: #{tpu_custom_call.1} parent=11 // pred_fallthru
          _
        // Predicated region
        $region17: #{tpu_custom_call.1} parent=11 // pred_check
          %p110 = pneg %p55
        $region18: #{tpu_custom_call.1} parent=11 // pred_check_branch
          %112 = sbr.rel (%p110) target = $region20
        $region19: #{tpu_custom_call.1} parent=11 // pred_region
          %114 = vsyncadd [#allocation6], 0
          %s115 = sshll.u32 %s1, 4
          %s116 = int_to_ptr.hbm [resolvable:$true] %s115
          %s117 = sshll.u32 [#allocation5], 4
          %s118 = int_to_ptr.vmem [resolvable:$true] %s117
          %123 = dma.hbm_to_vmem [thread:$0]  %s116, 256, %s118, [#allocation6], 128, 128, 8
        $region20: #{tpu_custom_call.1} parent=11 // pred_fallthru
          _
      $region12: #{tpu_custom_call.1} parent=5 // pred_fallthru
        _
      %p124 = scmp.lt.s32.totalorder %s13, 2
      // Predicated region
      $region21: #{tpu_custom_call.1} parent=5 // pred_check
        %p125 = pneg %p124
      $region22: #{tpu_custom_call.1} parent=5 // pred_check_branch
        %127 = sbr.rel (%p125) target = $region24
      $region23: #{tpu_custom_call.1} parent=5 // pred_region
        _
      $region24: #{tpu_custom_call.1} parent=5 // pred_fallthru
        _
      %p128 = scmp.le.s32.totalorder 1, %s13
      %p129 = scmp.lt.s32.totalorder %s13, 3
      %p130 = pnand %p128, %p129
      %p131 = pneg %p130
      // Predicated region
      $region25: #{tpu_custom_call.1} parent=5 // pred_check
        _
      $region26: #{tpu_custom_call.1} parent=5 // pred_check_branch
        %133 = sbr.rel (%p130) target = $region28
      $region27: #{tpu_custom_call.1} parent=5 // pred_region
        %s134 = ssub.s32 %s13, 1
        // Predicated region
        $region29: #{tpu_custom_call.1} parent=27 // pred_check
          %p135 = pneg %p34
        $region30: #{tpu_custom_call.1} parent=27 // pred_check_branch
          %137 = sbr.rel (%p135) target = $region32
        $region31: #{tpu_custom_call.1} parent=27 // pred_region
          %139 = dma.done [#allocation3], 256
        $region32: #{tpu_custom_call.1} parent=27 // pred_fallthru
          _
        // Predicated region
        $region33: #{tpu_custom_call.1} parent=27 // pred_check
          %p140 = pneg %p55
        $region34: #{tpu_custom_call.1} parent=27 // pred_check_branch
          %142 = sbr.rel (%p140) target = $region36
        $region35: #{tpu_custom_call.1} parent=27 // pred_region
          %144 = dma.done [#allocation6], 256
        $region36: #{tpu_custom_call.1} parent=27 // pred_fallthru
          _
        %p145 = pneg %p34
        %p146 = pneg %p31
        %p147 = pneg %p55
        %p148 = pneg %p52
        %p149 = pneg %p81
        %p150 = pneg %p78
        %s151 = sand.u32 %s68, 1
        %s152 = scalar_lea.sflag [#allocation4], %s151
        %s153 = sand.u32 %s68, 1
        %s154 = smul.addr %s153, 8
        %s155 = scalar_lea.vmem [#allocation7], %s154
        %s156 = smul.u32 %s18, 8
        %s157 = scalar_lea.vmem [#allocation5], %s156
        %v158 = vld [vmem:[%s157] sm:$0xff]
        %v159 = vld [vmem:[#allocation2] sm:$0xff]
        %v160 = vld [vmem:[#allocation2 + $0x8] sm:$0xff]
        %v161 = vld [vmem:[#allocation5] sm:$0xff]
        %v162 = vld [vmem:[#allocation5 + $0x8] sm:$0xff]
        %v163 = vmul.f32 %v159, %v161
        %v164 = vmul.f32 %v160, %v162
        %vm165 = vcmask 261120
        %v166 = vsel %vm165, %v163, 0.0
        %167 = vadd.xlane.f32.xlu0 %v166
        %v168 = vpop.xlane.xlu0 %167
        %v169 = vsel %vm165, %v164, 0.0
        %170 = vadd.xlane.f32.xlu0 %v169
        %v171 = vpop.xlane.xlu0 %170
        %v172 = vmul.f32 %v168, 20.0
        %v173 = vmul.f32 %v171, 20.0
        %v174 = vsub.f32 20.0, %v172
        %v175 = vsub.f32 20.0, %v173
        %v177 = vsel %vm165, %v159, 0
        %v180 = vsel %vm165, %v160, 0
        %v183 = vsel %vm165, %v158, 0
        %185 = vmatpush.xpose.msra.mxu0 0.0
        %186 = vmatpush.xpose.msra.mxu0 0.0
        %187 = vmatpush.xpose.msra.mxu0 0.0
        %188 = vmatpush.xpose.msra.mxu0 0.0
        %189 = vmatpush.xpose.msra.mxu0 0.0
        %190 = vmatpush.xpose.msra.mxu0 0.0
        %191 = vmatpush.xpose.msra.mxu0 0.0
        %192 = vmatpush.xpose.msra.mxu0 0.0
        %193 = vmatpush.xpose.msra.mxu0 0.0
        %194 = vmatpush.xpose.msra.mxu0 0.0
        %195 = vmatpush.xpose.msra.mxu0 0.0
        %196 = vmatpush.xpose.msra.mxu0 0.0
        %197 = vmatpush.xpose.msra.mxu0 0.0
        %198 = vmatpush.xpose.msra.mxu0 0.0
        %199 = vmatpush.xpose.msra.mxu0 0.0
        %200 = vmatpush.xpose.msra.mxu0 %v183
        %201 = vmatmul.f32.gmra.mxu0 %v177
        %v202 = vpop.f32.mrf.mxu0
        %v203 = vadd.f32 0.0, %v202
        %204 = vmatmul.f32.gmra.mxu0 %v180
        %v205 = vpop.f32.mrf.mxu0
        %v206 = vadd.f32 0.0, %v205
        %207 = vdwg.mxu0
        %v208 = vlaneseq
        %v209 = vshrl.u32 %v208, 7
        %v210 = vadd.s32 %v209, 8
        %v211 = vlaneseq
        %v212 = vand.u32 %v211, 127
        %v213 = vstv %s156
        %v214 = vadd.s32 %v212, %v213
        %vm215 = vcmp.eq.s32.totalorder %v209, %v214
        %vm216 = vcmp.eq.s32.totalorder %v210, %v214
        %v217 = vsel %vm215, %v203, 0.0
        %v218 = vsel %vm216, %v206, 0.0
        %vm219 = vcmask 64512
        %v220 = vsel %vm219, %v217, 0.0
        %v221 = vsel %vm219, %v218, 0.0
        %v222 = vadd.f32 %v220, %v221
        %v223 = vrot.slane %v222, 4
        %v224 = vadd.f32 %v222, %v223
        %v225 = vrot.slane %v224, 2
        %v226 = vadd.f32 %v224, %v225
        %v227 = vrot.slane %v226, 1
        %v228 = vadd.f32 %v226, %v227
        %v229 = vmul.f32 %v228, 20.0
        %v230 = vsub.f32 20.0, %v229
        %v231 = vmul.f32 %v203, 20.0
        %v232 = vmul.f32 %v206, 20.0
        %v233 = vsub.f32 %v231, 20.0
        %v234 = vsub.f32 %v232, 20.0
        %v235 = vmul.f32 %v233, 1.442695
        %v236 = vpow.pop %v235
        %v237 = vmul.f32 %v234, 1.442695
        %v238 = vpow.pop %v237
        %v239 = vmul.f32 %v174, 1.442695
        %v240 = vpow.pop %v239
        %v241 = vmul.f32 %v175, 1.442695
        %v242 = vpow.pop %v241
        %v243 = vmul.f32 %v230, 1.442695
        %v244 = vpow.pop %v243
        %v245 = vmul.f32 %v244, %v236
        %v246 = vmul.f32 %v244, %v238
        %v247 = vadd.f32 %v245, 1.0
        %v248 = vadd.f32 %v246, 1.0
        %v249 = vmul.f32 %v240, %v236
        %v250 = vmul.f32 %v242, %v238
        %v251 = vadd.f32 %v249, 1.0
        %v252 = vadd.f32 %v250, 1.0
        %v253 = vmul.f32 %v247, %v251
        %v254 = vmul.f32 %v248, %v252
        %v255 = vlog2.pop %v253
        %v256 = vmul.f32 %v255, 0.6931472
        %v257 = vlog2.pop %v254
        %v258 = vmul.f32 %v257, 0.6931472
        %v259 = vsel %vm219, %v256, 0.0
        %260 = vadd.xlane.f32.xlu0 %v259
        %v261 = vpop.xlane.xlu0 %260
        %v262 = vsel %vm219, %v258, 0.0
        %263 = vadd.xlane.f32.xlu0 %v262
        %v264 = vpop.xlane.xlu0 %263
        %v265 = vadd.f32 %v261, %v264
        %v266 = vrot.slane %v265, 4
        %v267 = vadd.f32 %v265, %v266
        %v268 = vrot.slane %v267, 2
        %v269 = vadd.f32 %v267, %v268
        %v270 = vrot.slane %v269, 1
        %v271 = vadd.f32 %v269, %v270
        %v272 = vadd.f32 %v271, 0.0
        %273 = vst [vmem:[%s155] sm:$0xff] %v272
        %s274 = sand.u32 %s68, 1
        %s275 = scalar_lea.sflag [#allocation4], %s274
        %s276 = sand.u32 %s68, 1
        %s277 = smul.addr %s276, 8
        %s278 = scalar_lea.vmem [#allocation7], %s277
        // Predicated region
        $region37: #{tpu_custom_call.1} parent=27 // pred_check
          %p279 = pneg %p78
        $region38: #{tpu_custom_call.1} parent=27 // pred_check_branch
          %281 = sbr.rel (%p279) target = $region40
        $region39: #{tpu_custom_call.1} parent=27 // pred_region
          %283 = vsyncadd %s275, 0
          %s284 = smul.addr %s18, 8
          %s285 = scalar_lea.hbm %s2, %s284
          %s287 = sshll.u32 %s278, 4
          %s288 = int_to_ptr.vmem [resolvable:$true] %s287
          %s289 = sshll.u32 %s285, 4
          %s290 = int_to_ptr.hbm [resolvable:$true] %s289
          %292 = dma.vmem_to_hbm [thread:$0]  %s288, 128, %s290, %s275
        $region40: #{tpu_custom_call.1} parent=27 // pred_fallthru
          _
      $region28: #{tpu_custom_call.1} parent=5 // pred_fallthru
        _
      %p293 = scmp.le.s32.totalorder 2, %s13
      // Predicated region
      $region41: #{tpu_custom_call.1} parent=5 // pred_check
        %p294 = pneg %p293
      $region42: #{tpu_custom_call.1} parent=5 // pred_check_branch
        %296 = sbr.rel (%p294) target = $region44
      $region43: #{tpu_custom_call.1} parent=5 // pred_region
        %s297 = ssub.s32 %s13, 2
        // Predicated region
        $region45: #{tpu_custom_call.1} parent=43 // pred_check
          %p298 = pneg %p84
        $region46: #{tpu_custom_call.1} parent=43 // pred_check_branch
          %300 = sbr.rel (%p298) target = $region48
        $region47: #{tpu_custom_call.1} parent=43 // pred_region
          %s301 = sand.u32 %s69, 1
          %s302 = scalar_lea.sflag [#allocation4], %s301
          %s303 = sand.u32 %s69, 1
          %s304 = smul.addr %s303, 8
          %s305 = scalar_lea.vmem [#allocation7], %s304
          %307 = dma.done %s302, 128
        $region48: #{tpu_custom_call.1} parent=43 // pred_fallthru
          _
      $region44: #{tpu_custom_call.1} parent=5 // pred_fallthru
        _
    $region6: #{tpu_custom_call.1} parent=1 // loop_footer
      %s17 = sadd.s32 1, %s13
    $region7: #{tpu_custom_call.1} parent=1 // loop_footer_branch
      %12 = sbr.rel target = $region3
    $region8: #{tpu_custom_call.1} parent=1 // loop_exit
      _
    %308 = vsyncpa [#allocation3], 1
    %s309 = scalar_lea.sflag [#allocation3], 1
    %310 = vsyncpa %s309, 1
    %311 = vsyncpa [#allocation6], 1
    %312 = vsyncpa [#allocation4], 1
    %s313 = scalar_lea.sflag [#allocation4], 1
    %314 = vsyncpa %s313, 1

</llo_original>
